<compile_context>
chip_gen: v5e
topology: v5e:2x2
jax: 0.10.0
libtpu: 0.0.40
codegen_flags: <defaults>
</compile_context>

<pallas_src>
import jax
import jax.numpy as jnp
from jax.experimental import pallas as pl
from jax.experimental.pallas import tpu as pltpu

EPS = 1e-12  # matches torch.nn.functional.normalize default eps


def _round_up(x, m):
    return ((x + m - 1) // m) * m


def _pick_d_tile(D, max_tile=384):
    """Tile the embed axis: lane dim stays a multiple of 128 (or full D) and
    realistic dims get >= 2 tiles so v7x's two TensorCores stay balanced."""
    if D % 128 != 0 or D <= max_tile:
        return D
    for dt in range(max_tile, 127, -128):
        if D % dt == 0:
            return dt
    return D


def _vmem_limit_bytes():
    """Generation-aware scoped-VMEM limit (128 MiB on v5e/v6e, 64 MiB on v7x)."""
    cap = None
    try:
        cap = getattr(pltpu.get_tpu_info(), "vmem_capacity_bytes", None)
    except Exception:
        cap = None
    if not cap:
        cap = 64 * 1024 * 1024
    return int(min(cap * 3 // 4, 100 * 1024 * 1024))


def _make_coda_kernel(f, f8, L, Lh):
    """Kernel for one (layer, D-tile) grid step.

    x: (B, D) f32; K, A: (f8, D) f32; p: (f8, L, Dt);
    ek: (B, Lh, Dt); ev: (B, L - Lh, Dt).
    f8 = rows actually DMA'd (f rounded up to a multiple of 8, capped at pool);
    columns [f:f8) of the similarity are masked to zero.
    """

    def kernel(x_ref, k_ref, a_ref, p_ref, ek_ref, ev_ref):
        x = x_ref[...]
        K = k_ref[...]
        A = a_ref[...]

        # n_K = F.normalize(K, dim=1)  ==  K / max(||K||, eps)
        nK = K * jax.lax.rsqrt(
            jnp.maximum(jnp.sum(K * K, axis=-1, keepdims=True), EPS * EPS))

        # Cosine similarity, un-fused into two MXU calls:
        #   num[b,k]  = <x[b],       A[k]*nK[k]>
        #   den2[b,k] = <x[b]*x[b],  A[k]*A[k]>  (= ||x[b]*A[k]||^2)
        num = jax.lax.dot_general(x, A * nK, (((1,), (1,)), ((), ())),
                                  preferred_element_type=jnp.float32)   # (B, f8)
        den2 = jax.lax.dot_general(x * x, A * A, (((1,), (1,)), ((), ())),
                                   preferred_element_type=jnp.float32)  # (B, f8)
        aq = num * jax.lax.rsqrt(jnp.maximum(den2, EPS * EPS))           # (B, f8)

        if f8 != f:  # zero the padded pool rows [f:f8)
            col = jax.lax.broadcasted_iota(jnp.int32, aq.shape, 1)
            aq = jnp.where(col < f, aq, 0.0)

        aq = aq.astype(p_ref.dtype)  # match prompt stream dtype for the MXU

        # P_[:, pos, :] = aq @ p[:, pos, :]; K-half and V-half go straight to
        # their own (lane-dense) outputs -> no post-kernel slicing.
        for pos in range(L):
            r = jnp.dot(aq, p_ref[:, pos, :], preferred_element_type=jnp.float32)
            if pos < Lh:
                ek_ref[:, pos, :] = r.astype(ek_ref.dtype)
            else:
                ev_ref[:, pos - Lh, :] = r.astype(ev_ref.dtype)

    return kernel


def coda_prompt_forward(x_querry, K_all, A_all, p_all, *, task_count,
                        n_tasks, e_pool_size, e_p_length,
                        out_dtype=None, d_tile=None):
    """CodaPrompt.forward.

    x_querry: (B, D) f32; K_all/A_all: (nL, pool, D); p_all: (nL, pool, L, D).
    p_all may be bf16 (cast it ONCE outside and reuse across steps to halve
    its HBM stream); K/A/x are promoted to f32 so cosine sims stay f32.
    out_dtype: dtype of Ek/Ev (bf16 halves output writeback); default x dtype.
    Returns ((Ek, Ev), loss) with Ek: (nL, B, L//2, D), Ev: (nL, B, L-L//2, D).
    """
    nL, pool, D = K_all.shape
    B = x_querry.shape[0]
    L = e_p_length
    Lh = L // 2
    Lv = L - Lh
    assert p_all.shape == (nL, pool, L, D)
    assert L >= 2, "e_p_length must be >= 2 (K/V split)"

    pt = e_pool_size // n_tasks
    f = (task_count + 1) * pt                 # active prompt rows (eval & train fwd)
    f8 = min(_round_up(f, 8), pool)           # rows actually fetched (sublane aligned)
    Dt = d_tile or _pick_d_tile(D)
    assert D % Dt == 0
    nDT = D // Dt
    if out_dtype is None:
        out_dtype = x_querry.dtype

    x_querry = x_querry.astype(jnp.float32)
    K_all = K_all.astype(jnp.float32)
    A_all = A_all.astype(jnp.float32)

    p_item = jnp.dtype(p_all.dtype).itemsize
    o_item = jnp.dtype(out_dtype).itemsize
    bytes_accessed = (B * D * 4 + 2 * nL * f8 * D * 4
                      + nL * f8 * L * D * p_item + nL * B * L * D * o_item)
    flops = nL * nDT * (2 * (2 * B) * D * f8) + nL * 2 * B * f8 * L * D
    trans = nL * nDT * (f8 + B * f8)
    cost = pl.CostEstimate(flops=int(flops), transcendentals=int(trans),
                           bytes_accessed=int(bytes_accessed))

    kernel = _make_coda_kernel(f, f8, L, Lh)

    Ek, Ev = pl.pallas_call(
        kernel,
        out_shape=(jax.ShapeDtypeStruct((nL, B, Lh, D), out_dtype),
                   jax.ShapeDtypeStruct((nL, B, Lv, D), out_dtype)),
        grid=(nL, nDT),
        in_specs=[
            pl.BlockSpec((B, D), lambda l, j: (0, 0)),                 # x (resident)
            pl.BlockSpec((None, f8, D), lambda l, j: (l, 0, 0)),       # K layer l
            pl.BlockSpec((None, f8, D), lambda l, j: (l, 0, 0)),       # A layer l
            pl.BlockSpec((None, f8, L, Dt), lambda l, j: (l, 0, 0, j)),  # p layer l, D-tile j
        ],
        out_specs=(
            pl.BlockSpec((None, B, Lh, Dt), lambda l, j: (l, 0, 0, j)),  # Ek
            pl.BlockSpec((None, B, Lv, Dt), lambda l, j: (l, 0, 0, j)),  # Ev
        ),
        compiler_params=pltpu.CompilerParams(
            dimension_semantics=("parallel", "parallel"),  # layer x D-tile -> 2 TCs on v7x
            vmem_limit_bytes=_vmem_limit_bytes()),
        cost_estimate=cost,
    )(x_querry, K_all, A_all, p_all)

    # TODO(synk): training-mode detach()/clone() of rows [0:s) is gradient-only
    # plumbing; forward values are identical, so it is not materialized here.
    loss = 0
    return (Ek, Ev), loss


def _reference(x, K_all, A_all, p_all, f, L):
    """Pure-JAX reference of the PyTorch forward (f32)."""
    nL = K_all.shape[0]
    i = L // 2
    outs = []
    for l in range(nL):
        K, A, p = K_all[l, :f], A_all[l, :f], p_all[l, :f]
        nK = K / jnp.maximum(jnp.linalg.norm(K, axis=1, keepdims=True), EPS)
        a_q = x[:, None, :] * A[None, :, :]
        q = a_q / jnp.maximum(jnp.linalg.norm(a_q, axis=2, keepdims=True), EPS)
        aq_k = jnp.einsum('bkd,kd->bk', q, nK)
        outs.append(jnp.einsum('bk,kld->bld', aq_k, p))
    P = jnp.stack(outs, axis=0)
    return P[:, :, :i, :], P[:, :, i:, :]


if __name__ == "__main__":
    # Small deterministic config consistent with the module's __init__.
    n_tasks = 4
    e_pool_size = 20          # pool ; pt = 5 (deliberately NOT a multiple of 8)
    e_p_length = 4            # L -> 2 key slots + 2 value slots
    e_layers = [0, 1, 2]
    embed_dim = 128           # D (key_embed_dim == embed_dim)
    batch = 4

    nL = len(e_layers)
    key = jax.random.PRNGKey(0)
    kx, kk, ka, kp = jax.random.split(key, 4)

    # Parameters: nn.init.uniform_(p, -1, 1), deterministic here.
    # TODO(synk): gram_schmidt re-orthonormalization at init is host-side,
    # data-dependent (torch.randn + while-redo) parameter preprocessing; it
    # does not change the forward-pass math, so params stay plain uniform.
    K_all = jax.random.uniform(kk, (nL, e_pool_size, embed_dim), jnp.float32, -1.0, 1.0)
    A_all = jax.random.uniform(ka, (nL, e_pool_size, embed_dim), jnp.float32, -1.0, 1.0)
    p_all = jax.random.uniform(kp, (nL, e_pool_size, e_p_length, embed_dim),
                               jnp.float32, -1.0, 1.0)
    x_querry = jax.random.uniform(kx, (batch, embed_dim), jnp.float32, -1.0, 1.0)

    common = dict(n_tasks=n_tasks, e_pool_size=e_pool_size, e_p_length=e_p_length)

    # One-time (amortized across forward calls) bf16 copy of the prompt pool.
    p_bf16 = p_all.astype(jnp.bfloat16)

    # 1) f32 path, task_count=1  (f=10 -> rows padded to f8=16 and masked).
    (Ek1, Ev1), loss = coda_prompt_forward(x_querry, K_all, A_all, p_all,
                                           task_count=1, **common)
    # 2) f32 path, task_count=3  (f == pool, no masking branch).
    (Ek3, Ev3), _ = coda_prompt_forward(x_querry, K_all, A_all, p_all,
                                        task_count=3, **common)
    # 3) bf16-streamed prompts + bf16 outputs (low-HBM config).
    (Ekb, Evb), _ = coda_prompt_forward(x_querry, K_all, A_all, p_bf16,
                                        task_count=1, out_dtype=jnp.bfloat16,
                                        **common)
    jax.block_until_ready((Ek1, Ev1, Ek3, Ev3, Ekb, Evb))

    pt = e_pool_size // n_tasks
    rEk1, rEv1 = _reference(x_querry, K_all, A_all, p_all, (1 + 1) * pt, e_p_length)
    rEk3, rEv3 = _reference(x_querry, K_all, A_all, p_all, (3 + 1) * pt, e_p_length)

    i = e_p_length // 2
    assert Ek1.shape == (nL, batch, i, embed_dim)
    assert Ev1.shape == (nL, batch, e_p_length - i, embed_dim)
    assert loss == 0
    # f32 paths: tight tolerance (only matmul accumulation order differs).
    assert jnp.allclose(Ek1, rEk1, atol=1e-3, rtol=1e-3)
    assert jnp.allclose(Ev1, rEv1, atol=1e-3, rtol=1e-3)
    assert jnp.allclose(Ek3, rEk3, atol=1e-3, rtol=1e-3)
    assert jnp.allclose(Ev3, rEv3, atol=1e-3, rtol=1e-3)
    # bf16 prompts + bf16 outputs: loose tolerance (bf16 rounding only).
    assert jnp.allclose(Ekb.astype(jnp.float32), rEk1, atol=1e-1, rtol=5e-2)
    assert jnp.allclose(Evb.astype(jnp.float32), rEv1, atol=1e-1, rtol=5e-2)

    print("KERNEL_OK")
</pallas_src>

<mosaic_0001>
module attributes {stable_mosaic.version = 11 : i64} {
  func.func @kernel(%arg0: i32, %arg1: i32, %arg2: memref<4x128xf32, #tpu.memory_space<vmem>>, %arg3: memref<1x16x128xf32, #tpu.memory_space<vmem>>, %arg4: memref<1x16x128xf32, #tpu.memory_space<vmem>>, %arg5: memref<1x16x4x128xf32, #tpu.memory_space<vmem>>, %arg6: memref<1x4x2x128xf32, #tpu.memory_space<vmem>>, %arg7: memref<1x4x2x128xf32, #tpu.memory_space<vmem>>) attributes {dimension_semantics = [#tpu.dimension_semantics<parallel>, #tpu.dimension_semantics<parallel>], iteration_bounds = array<i64: 3, 1>, scalar_prefetch = 0 : i64, scratch_operands = 0 : i64, tpu.core_type = #tpu.core_type<tc>, window_params = [{pipeline_mode = #tpu.pipeline_mode<synchronous>, transform_indices = @transform_0, window_bounds = array<i64: 4, 128>}, {transform_indices = @transform_1, window_bounds = array<i64: 1, 16, 128>}, {transform_indices = @transform_2, window_bounds = array<i64: 1, 16, 128>}, {transform_indices = @transform_3, window_bounds = array<i64: 1, 16, 4, 128>}, {transform_indices = @transform_4, window_bounds = array<i64: 1, 4, 2, 128>}, {transform_indices = @transform_5, window_bounds = array<i64: 1, 4, 2, 128>}]} {
    %c0 = arith.constant 0 : index
    %c0_0 = arith.constant 0 : index
    %0 = vector.load %arg2[%c0, %c0_0] : memref<4x128xf32, #tpu.memory_space<vmem>>, vector<4x128xf32>
    %c0_1 = arith.constant 0 : index
    %c0_2 = arith.constant 0 : index
    %c0_3 = arith.constant 0 : index
    %1 = vector.load %arg3[%c0_1, %c0_2, %c0_3] : memref<1x16x128xf32, #tpu.memory_space<vmem>>, vector<1x16x128xf32>
    %2 = vector.shape_cast %1 : vector<1x16x128xf32> to vector<16x128xf32>
    %c0_4 = arith.constant 0 : index
    %c0_5 = arith.constant 0 : index
    %c0_6 = arith.constant 0 : index
    %3 = vector.load %arg4[%c0_4, %c0_5, %c0_6] : memref<1x16x128xf32, #tpu.memory_space<vmem>>, vector<1x16x128xf32>
    %4 = vector.shape_cast %3 : vector<1x16x128xf32> to vector<16x128xf32>
    %5 = arith.mulf %2, %2 : vector<16x128xf32>
    %cst = arith.constant dense<0.000000e+00> : vector<16xf32>
    %6 = vector.multi_reduction <add>, %5, %cst [1] : vector<16x128xf32> to vector<16xf32>
    %7 = vector.shape_cast %6 : vector<16xf32> to vector<16x1xf32>
    %cst_7 = arith.constant 1.000000e-24 : f32
    %8 = vector.broadcast %cst_7 : f32 to vector<16x1xf32>
    %9 = arith.maximumf %7, %8 : vector<16x1xf32>
    %10 = math.rsqrt %9 : vector<16x1xf32>
    %11 = vector.broadcast %10 : vector<16x1xf32> to vector<16x128xf32>
    %12 = arith.mulf %2, %11 : vector<16x128xf32>
    %13 = arith.mulf %4, %12 : vector<16x128xf32>
    %cst_8 = arith.constant dense<0.000000e+00> : vector<4x16xf32>
    %14 = tpu.matmul %0, %13, %cst_8 {dimension_numbers = #tpu.dot_dimension_numbers<[1], [1], [0], [0], [0, 0, 1, 0], [], []>} : vector<4x128xf32>, vector<16x128xf32>, vector<4x16xf32> -> vector<4x16xf32>
    %15 = arith.mulf %0, %0 : vector<4x128xf32>
    %16 = arith.mulf %4, %4 : vector<16x128xf32>
    %cst_9 = arith.constant dense<0.000000e+00> : vector<4x16xf32>
    %17 = tpu.matmul %15, %16, %cst_9 {dimension_numbers = #tpu.dot_dimension_numbers<[1], [1], [0], [0], [0, 0, 1, 0], [], []>} : vector<4x128xf32>, vector<16x128xf32>, vector<4x16xf32> -> vector<4x16xf32>
    %cst_10 = arith.constant 1.000000e-24 : f32
    %18 = vector.broadcast %cst_10 : f32 to vector<4x16xf32>
    %19 = arith.maximumf %17, %18 : vector<4x16xf32>
    %20 = math.rsqrt %19 : vector<4x16xf32>
    %21 = arith.mulf %14, %20 : vector<4x16xf32>
    %22 = tpu.iota {dimensions = array<i32: 1>} : vector<4x16xi32>
    %c10_i32 = arith.constant 10 : i32
    %23 = vector.broadcast %c10_i32 : i32 to vector<4x16xi32>
    %24 = arith.cmpi slt, %22, %23 : vector<4x16xi32>
    %cst_11 = arith.constant 0.000000e+00 : f32
    %25 = vector.broadcast %cst_11 : f32 to vector<4x16xf32>
    %26 = arith.select %24, %21, %25 : vector<4x16xi1>, vector<4x16xf32>
    %c0_12 = arith.constant 0 : index
    %c0_13 = arith.constant 0 : index
    %c0_14 = arith.constant 0 : index
    %c0_15 = arith.constant 0 : index
    %27 = vector.load %arg5[%c0_12, %c0_13, %c0_14, %c0_15] : memref<1x16x4x128xf32, #tpu.memory_space<vmem>>, vector<1x16x1x128xf32>
    %28 = vector.shape_cast %27 : vector<1x16x1x128xf32> to vector<16x128xf32>
    %cst_16 = arith.constant dense<0.000000e+00> : vector<4x128xf32>
    %29 = tpu.matmul %26, %28, %cst_16 {dimension_numbers = #tpu.dot_dimension_numbers<[1], [0], [0], [1], [0, 0, 1, 1], [], []>} : vector<4x16xf32>, vector<16x128xf32>, vector<4x128xf32> -> vector<4x128xf32>
    %c0_17 = arith.constant 0 : index
    %c0_18 = arith.constant 0 : index
    %c0_19 = arith.constant 0 : index
    %c0_20 = arith.constant 0 : index
    %30 = vector.load %arg6[%c0_17, %c0_18, %c0_19, %c0_20] : memref<1x4x2x128xf32, #tpu.memory_space<vmem>>, vector<1x4x1x128xf32>
    %31 = vector.shape_cast %30 : vector<1x4x1x128xf32> to vector<4x128xf32>
    %32 = vector.shape_cast %29 : vector<4x128xf32> to vector<1x4x1x128xf32>
    tpu.vector_store %arg6[%c0_17, %c0_18, %c0_19, %c0_20], %32 {strides = array<i32>} : memref<1x4x2x128xf32, #tpu.memory_space<vmem>>, vector<1x4x1x128xf32>,
    %c0_21 = arith.constant 0 : index
    %c0_22 = arith.constant 0 : index
    %c1 = arith.constant 1 : index
    %c0_23 = arith.constant 0 : index
    %33 = vector.load %arg5[%c0_21, %c0_22, %c1, %c0_23] : memref<1x16x4x128xf32, #tpu.memory_space<vmem>>, vector<1x16x1x128xf32>
    %34 = vector.shape_cast %33 : vector<1x16x1x128xf32> to vector<16x128xf32>
    %cst_24 = arith.constant dense<0.000000e+00> : vector<4x128xf32>
    %35 = tpu.matmul %26, %34, %cst_24 {dimension_numbers = #tpu.dot_dimension_numbers<[1], [0], [0], [1], [0, 0, 1, 1], [], []>} : vector<4x16xf32>, vector<16x128xf32>, vector<4x128xf32> -> vector<4x128xf32>
    %c0_25 = arith.constant 0 : index
    %c0_26 = arith.constant 0 : index
    %c1_27 = arith.constant 1 : index
    %c0_28 = arith.constant 0 : index
    %36 = vector.load %arg6[%c0_25, %c0_26, %c1_27, %c0_28] : memref<1x4x2x128xf32, #tpu.memory_space<vmem>>, vector<1x4x1x128xf32>
    %37 = vector.shape_cast %36 : vector<1x4x1x128xf32> to vector<4x128xf32>
    %38 = vector.shape_cast %35 : vector<4x128xf32> to vector<1x4x1x128xf32>
    tpu.vector_store %arg6[%c0_25, %c0_26, %c1_27, %c0_28], %38 {strides = array<i32>} : memref<1x4x2x128xf32, #tpu.memory_space<vmem>>, vector<1x4x1x128xf32>,
    %c0_29 = arith.constant 0 : index
    %c0_30 = arith.constant 0 : index
    %c2 = arith.constant 2 : index
    %c0_31 = arith.constant 0 : index
    %39 = vector.load %arg5[%c0_29, %c0_30, %c2, %c0_31] : memref<1x16x4x128xf32, #tpu.memory_space<vmem>>, vector<1x16x1x128xf32>
    %40 = vector.shape_cast %39 : vector<1x16x1x128xf32> to vector<16x128xf32>
    %cst_32 = arith.constant dense<0.000000e+00> : vector<4x128xf32>
    %41 = tpu.matmul %26, %40, %cst_32 {dimension_numbers = #tpu.dot_dimension_numbers<[1], [0], [0], [1], [0, 0, 1, 1], [], []>} : vector<4x16xf32>, vector<16x128xf32>, vector<4x128xf32> -> vector<4x128xf32>
    %c0_33 = arith.constant 0 : index
    %c0_34 = arith.constant 0 : index
    %c0_35 = arith.constant 0 : index
    %c0_36 = arith.constant 0 : index
    %42 = vector.load %arg7[%c0_33, %c0_34, %c0_35, %c0_36] : memref<1x4x2x128xf32, #tpu.memory_space<vmem>>, vector<1x4x1x128xf32>
    %43 = vector.shape_cast %42 : vector<1x4x1x128xf32> to vector<4x128xf32>
    %44 = vector.shape_cast %41 : vector<4x128xf32> to vector<1x4x1x128xf32>
    tpu.vector_store %arg7[%c0_33, %c0_34, %c0_35, %c0_36], %44 {strides = array<i32>} : memref<1x4x2x128xf32, #tpu.memory_space<vmem>>, vector<1x4x1x128xf32>,
    %c0_37 = arith.constant 0 : index
    %c0_38 = arith.constant 0 : index
    %c3 = arith.constant 3 : index
    %c0_39 = arith.constant 0 : index
    %45 = vector.load %arg5[%c0_37, %c0_38, %c3, %c0_39] : memref<1x16x4x128xf32, #tpu.memory_space<vmem>>, vector<1x16x1x128xf32>
    %46 = vector.shape_cast %45 : vector<1x16x1x128xf32> to vector<16x128xf32>
    %cst_40 = arith.constant dense<0.000000e+00> : vector<4x128xf32>
    %47 = tpu.matmul %26, %46, %cst_40 {dimension_numbers = #tpu.dot_dimension_numbers<[1], [0], [0], [1], [0, 0, 1, 1], [], []>} : vector<4x16xf32>, vector<16x128xf32>, vector<4x128xf32> -> vector<4x128xf32>
    %c0_41 = arith.constant 0 : index
    %c0_42 = arith.constant 0 : index
    %c1_43 = arith.constant 1 : index
    %c0_44 = arith.constant 0 : index
    %48 = vector.load %arg7[%c0_41, %c0_42, %c1_43, %c0_44] : memref<1x4x2x128xf32, #tpu.memory_space<vmem>>, vector<1x4x1x128xf32>
    %49 = vector.shape_cast %48 : vector<1x4x1x128xf32> to vector<4x128xf32>
    %50 = vector.shape_cast %47 : vector<4x128xf32> to vector<1x4x1x128xf32>
    tpu.vector_store %arg7[%c0_41, %c0_42, %c1_43, %c0_44], %50 {strides = array<i32>} : memref<1x4x2x128xf32, #tpu.memory_space<vmem>>, vector<1x4x1x128xf32>,
    return
  }
  func.func @transform_0(%arg0: i32, %arg1: i32) -> (i32, i32) {
    %c0_i32 = arith.constant 0 : i32
    %c0_i32_0 = arith.constant 0 : i32
    %c0_i32_1 = arith.constant 0 : i32
    return %c0_i32, %c0_i32_0 : i32, i32
  }
  func.func @transform_1(%arg0: i32, %arg1: i32) -> (i32, i32, i32) {
    %c0_i32 = arith.constant 0 : i32
    %c0_i32_0 = arith.constant 0 : i32
    %c0_i32_1 = arith.constant 0 : i32
    return %arg0, %c0_i32, %c0_i32_0 : i32, i32, i32
  }
  func.func @transform_2(%arg0: i32, %arg1: i32) -> (i32, i32, i32) {
    %c0_i32 = arith.constant 0 : i32
    %c0_i32_0 = arith.constant 0 : i32
    %c0_i32_1 = arith.constant 0 : i32
    return %arg0, %c0_i32, %c0_i32_0 : i32, i32, i32
  }
  func.func @transform_3(%arg0: i32, %arg1: i32) -> (i32, i32, i32, i32) {
    %c0_i32 = arith.constant 0 : i32
    %c0_i32_0 = arith.constant 0 : i32
    %c0_i32_1 = arith.constant 0 : i32
    return %arg0, %c0_i32, %c0_i32_0, %arg1 : i32, i32, i32, i32
  }
  func.func @transform_4(%arg0: i32, %arg1: i32) -> (i32, i32, i32, i32) {
    %c0_i32 = arith.constant 0 : i32
    %c0_i32_0 = arith.constant 0 : i32
    %c0_i32_1 = arith.constant 0 : i32
    return %arg0, %c0_i32, %c0_i32_0, %arg1 : i32, i32, i32, i32
  }
  func.func @transform_5(%arg0: i32, %arg1: i32) -> (i32, i32, i32, i32) {
    %c0_i32 = arith.constant 0 : i32
    %c0_i32_0 = arith.constant 0 : i32
    %c0_i32_1 = arith.constant 0 : i32
    return %arg0, %c0_i32, %c0_i32_0, %arg1 : i32, i32, i32, i32
  }
}

</mosaic_0001>

<llo_original>
// kernel: tpu_custom_call.1
$region0: #{tpu_custom_call.1}
  #allocation0 [shape = 'u32[]', space=smem, size = 0x4, offset = 0x4, fixed_abs, tag = 'smem constant byte address 0x4 - core index']
  #allocation1 [shape = 'u32[72,128]{1,0:T(1,128)}', space=vmem, size = 0x9000, scoped, tag = 'internal scratch']
  %s0 = inlined_call_operand.hbm [shape: f32[4,128], index: 0, kind: input, shape index: {}]
  %s1 = inlined_call_operand.hbm [shape: f32[3,20,128], index: 1, kind: input, shape index: {}]
  %s2 = inlined_call_operand.hbm [shape: f32[3,20,128], index: 2, kind: input, shape index: {}]
  %s3 = inlined_call_operand.hbm [shape: f32[3,20,4,128], index: 3, kind: input, shape index: {}]
  %s4 = inlined_call_operand.hbm [shape: f32[3,4,2,128], index: 4, kind: output, shape index: {0}]
  %s5 = inlined_call_operand.hbm [shape: f32[3,4,2,128], index: 5, kind: output, shape index: {1}]
  %6 = xla_tuple %s4, %s5
  %s7 = sld [smem:[#allocation0]]
  $region73: #{tpu_custom_call.1} parent=0
    _
  %s9 = ssub.s32 1, %s7
  %s10 = scalar_select 0, %s9, %s7
  $region1: #{tpu_custom_call.1} parent=0
    #allocation2 [shape = 'u8[2048]{0}', space=vmem, size = 0x800, scoped, tag = 'input window, operand 0, single buffered']
    #allocation3 [shape = 's32[2]{0}', space=sflag, size = 0x8, scoped, tag = 'scoped memory for tpu_custom_call.1']
    #allocation4 [shape = 's32[2]{0}', space=sflag, size = 0x8, scoped, tag = 'scoped memory for tpu_custom_call.1']
    #allocation5 [shape = 'u8[16384]{0}', space=vmem, size = 0x4000, scoped, tag = 'input window, operand 1']
    #allocation6 [shape = 's32[2]{0}', space=sflag, size = 0x8, scoped, tag = 'scoped memory for tpu_custom_call.1']
    #allocation7 [shape = 'u8[16384]{0}', space=vmem, size = 0x4000, scoped, tag = 'input window, operand 2']
    #allocation8 [shape = 'u8[65536]{0}', space=vmem, size = 0x10000, scoped, tag = 'input window, operand 3']
    #allocation9 [shape = 's32[2]{0}', space=sflag, size = 0x8, scoped, tag = 'scoped memory for tpu_custom_call.1']
    #allocation10 [shape = 'u8[8192]{0}', space=vmem, size = 0x2000, scoped, tag = 'output window, operand 0']
    #allocation11 [shape = 'u8[8192]{0}', space=vmem, size = 0x2000, scoped, tag = 'output window, operand 1']
    #allocation12 [shape = 's32[2]{0}', space=sflag, size = 0x8, scoped, tag = 'scoped memory for tpu_custom_call.1']
    %11 = vsyncpa [#allocation3], 0
    %12 = vsyncpa [#allocation6], 0
    %s13 = scalar_lea.sflag [#allocation6], 1
    %14 = vsyncpa %s13, 0
    %15 = vsyncpa [#allocation9], 0
    %s16 = scalar_lea.sflag [#allocation9], 1
    %17 = vsyncpa %s16, 0
    %18 = vsyncpa [#allocation4], 0
    %s19 = scalar_lea.sflag [#allocation4], 1
    %20 = vsyncpa %s19, 0
    %21 = vsyncpa [#allocation12], 0
    %s22 = scalar_lea.sflag [#allocation12], 1
    %23 = vsyncpa %s22, 0
    loop: start=0, step=1, limit=5
    $region2: #{tpu_custom_call.1} parent=1 // loop_pre_header
      _
    $region3: #{tpu_custom_call.1} parent=1 // loop_header
      %s25 = sphi 0, %s29
      %p26 = scmp.ge.s32.totalorder %s25, 5
      %s32 = sphi 0, %s44
      %s33 = sphi 0, %s40
      %s34 = sphi 0, %s32
      %s35 = sphi 0, %s33
      %s36 = sphi 0, %s34
      %s37 = sphi 0, %s35
      %s45 = sphi 0, %s45
      %s47 = sphi 0, %s45
      %s48 = sphi 0, %s47
      %s62 = sphi 0, %s48
      %s68 = sphi 0, %s70
      %s71 = sphi 0, %s68
      %s72 = sphi 0, %s71
      %s88 = sphi 0, %s72
      %s94 = sphi 0, %s96
      %s97 = sphi 0, %s94
      %s98 = sphi 0, %s97
      %s114 = sphi 0, %s98
      %s122 = sphi 0, %s124
      %s125 = sphi 0, %s122
      %s126 = sphi 0, %s125
      %s142 = sphi 0, %s126
      %s150 = sphi 0, %s152
      %s153 = sphi 0, %s150
      %s154 = sphi 0, %s153
      %s170 = sphi 0, %s154
      %s178 = sphi 0, %s180
      %s181 = sphi 0, %s178
      %s182 = sphi 0, %s181
      %s198 = sphi 0, %s182
    $region4: #{tpu_custom_call.1} parent=1 // loop_header_branch
      %28 = sbr.rel (%p26) target = $region8
    $region5: #{tpu_custom_call.1} parent=1 // loop_body
      %s30 = ssub.s32 %s25, 1
      %s31 = ssub.s32 %s25, 2
      %s38 = sadd.s32 1, %s33
      %p39 = scmp.ge.s32.totalorder %s38, 1
      %s40 = scalar_select %p39, 0, %s38
      %s41 = sadd.s32 1, %s32
      %s42 = scalar_select %p39, %s41, %s32
      %p43 = scmp.ge.s32.totalorder %s42, 3
      %s44 = scalar_select %p43, 0, %s42
      %s46 = sadd.s32 %s45, 1
      %p49 = scmp.eq.s32.totalorder %s25, 2
      %p50 = scmp.ne.s32.totalorder %s45, %s47
      %p51 = scmp.eq.s32.totalorder %s25, 0
      %p52 = por %p50, %p51
      %p53 = scmp.ne.s32.totalorder %s45, %s47
      %p54 = scmp.eq.s32.totalorder %s30, 2
      %p55 = por %p53, %p54
      %p56 = scmp.ne.s32.totalorder %s47, %s48
      %p57 = scmp.eq.s32.totalorder %s30, 0
      %p58 = por %p56, %p57
      %p59 = scmp.ne.s32.totalorder %s47, %s48
      %p60 = scmp.eq.s32.totalorder %s31, 2
      %p61 = por %p59, %p60
      %p63 = scmp.ne.s32.totalorder %s48, %s62
      %p64 = scmp.eq.s32.totalorder %s31, 0
      %p65 = por %p63, %p64
      %s66 = ssub.s32 %s32, %s44
      %p67 = scmp.eq.s32.totalorder %s66, 0
      %s69 = sadd.s32 %s68, 1
      %s70 = scalar_select %p67, %s68, %s69
      %p73 = pneg %p67
      %p74 = scmp.eq.s32.totalorder %s25, 2
      %p75 = por %p73, %p74
      %p76 = scmp.ne.s32.totalorder %s68, %s71
      %p77 = scmp.eq.s32.totalorder %s25, 0
      %p78 = por %p76, %p77
      %p79 = scmp.ne.s32.totalorder %s68, %s71
      %p80 = scmp.eq.s32.totalorder %s30, 2
      %p81 = por %p79, %p80
      %p82 = scmp.ne.s32.totalorder %s71, %s72
      %p83 = scmp.eq.s32.totalorder %s30, 0
      %p84 = por %p82, %p83
      %p85 = scmp.ne.s32.totalorder %s71, %s72
      %p86 = scmp.eq.s32.totalorder %s31, 2
      %p87 = por %p85, %p86
      %p89 = scmp.ne.s32.totalorder %s72, %s88
      %p90 = scmp.eq.s32.totalorder %s31, 0
      %p91 = por %p89, %p90
      %s92 = ssub.s32 %s32, %s44
      %p93 = scmp.eq.s32.totalorder %s92, 0
      %s95 = sadd.s32 %s94, 1
      %s96 = scalar_select %p93, %s94, %s95
      %p99 = pneg %p93
      %p100 = scmp.eq.s32.totalorder %s25, 2
      %p101 = por %p99, %p100
      %p102 = scmp.ne.s32.totalorder %s94, %s97
      %p103 = scmp.eq.s32.totalorder %s25, 0
      %p104 = por %p102, %p103
      %p105 = scmp.ne.s32.totalorder %s94, %s97
      %p106 = scmp.eq.s32.totalorder %s30, 2
      %p107 = por %p105, %p106
      %p108 = scmp.ne.s32.totalorder %s97, %s98
      %p109 = scmp.eq.s32.totalorder %s30, 0
      %p110 = por %p108, %p109
      %p111 = scmp.ne.s32.totalorder %s97, %s98
      %p112 = scmp.eq.s32.totalorder %s31, 2
      %p113 = por %p111, %p112
      %p115 = scmp.ne.s32.totalorder %s98, %s114
      %p116 = scmp.eq.s32.totalorder %s31, 0
      %p117 = por %p115, %p116
      %s118 = ssub.s32 %s32, %s44
      %s119 = ssub.s32 %s33, %s40
      %s120 = sor.u32 %s118, %s119
      %p121 = scmp.eq.s32.totalorder %s120, 0
      %s123 = sadd.s32 %s122, 1
      %s124 = scalar_select %p121, %s122, %s123
      %p127 = pneg %p121
      %p128 = scmp.eq.s32.totalorder %s25, 2
      %p129 = por %p127, %p128
      %p130 = scmp.ne.s32.totalorder %s122, %s125
      %p131 = scmp.eq.s32.totalorder %s25, 0
      %p132 = por %p130, %p131
      %p133 = scmp.ne.s32.totalorder %s122, %s125
      %p134 = scmp.eq.s32.totalorder %s30, 2
      %p135 = por %p133, %p134
      %p136 = scmp.ne.s32.totalorder %s125, %s126
      %p137 = scmp.eq.s32.totalorder %s30, 0
      %p138 = por %p136, %p137
      %p139 = scmp.ne.s32.totalorder %s125, %s126
      %p140 = scmp.eq.s32.totalorder %s31, 2
      %p141 = por %p139, %p140
      %p143 = scmp.ne.s32.totalorder %s126, %s142
      %p144 = scmp.eq.s32.totalorder %s31, 0
      %p145 = por %p143, %p144
      %s146 = ssub.s32 %s32, %s44
      %s147 = ssub.s32 %s33, %s40
      %s148 = sor.u32 %s146, %s147
      %p149 = scmp.eq.s32.totalorder %s148, 0
      %s151 = sadd.s32 %s150, 1
      %s152 = scalar_select %p149, %s150, %s151
      %p155 = pneg %p149
      %p156 = scmp.eq.s32.totalorder %s25, 2
      %p157 = por %p155, %p156
      %p158 = scmp.ne.s32.totalorder %s150, %s153
      %p159 = scmp.eq.s32.totalorder %s25, 0
      %p160 = por %p158, %p159
      %p161 = scmp.ne.s32.totalorder %s150, %s153
      %p162 = scmp.eq.s32.totalorder %s30, 2
      %p163 = por %p161, %p162
      %p164 = scmp.ne.s32.totalorder %s153, %s154
      %p165 = scmp.eq.s32.totalorder %s30, 0
      %p166 = por %p164, %p165
      %p167 = scmp.ne.s32.totalorder %s153, %s154
      %p168 = scmp.eq.s32.totalorder %s31, 2
      %p169 = por %p167, %p168
      %p171 = scmp.ne.s32.totalorder %s154, %s170
      %p172 = scmp.eq.s32.totalorder %s31, 0
      %p173 = por %p171, %p172
      %s174 = ssub.s32 %s32, %s44
      %s175 = ssub.s32 %s33, %s40
      %s176 = sor.u32 %s174, %s175
      %p177 = scmp.eq.s32.totalorder %s176, 0
      %s179 = sadd.s32 %s178, 1
      %s180 = scalar_select %p177, %s178, %s179
      %p183 = pneg %p177
      %p184 = scmp.eq.s32.totalorder %s25, 2
      %p185 = por %p183, %p184
      %p186 = scmp.ne.s32.totalorder %s178, %s181
      %p187 = scmp.eq.s32.totalorder %s25, 0
      %p188 = por %p186, %p187
      %p189 = scmp.ne.s32.totalorder %s178, %s181
      %p190 = scmp.eq.s32.totalorder %s30, 2
      %p191 = por %p189, %p190
      %p192 = scmp.ne.s32.totalorder %s181, %s182
      %p193 = scmp.eq.s32.totalorder %s30, 0
      %p194 = por %p192, %p193
      %p195 = scmp.ne.s32.totalorder %s181, %s182
      %p196 = scmp.eq.s32.totalorder %s31, 2
      %p197 = por %p195, %p196
      %p199 = scmp.ne.s32.totalorder %s182, %s198
      %p200 = scmp.eq.s32.totalorder %s31, 0
      %p201 = por %p199, %p200
      %p202 = scmp.le.s32.totalorder 1, %s25
      %p203 = scmp.lt.s32.totalorder %s25, 4
      %p204 = pnand %p202, %p203
      %p205 = pneg %p204
      // Predicated region
      $region9: #{tpu_custom_call.1} parent=5 // pred_check
        _
      $region10: #{tpu_custom_call.1} parent=5 // pred_check_branch
        %207 = sbr.rel (%p204) target = $region12
      $region11: #{tpu_custom_call.1} parent=5 // pred_region
        %s208 = ssub.s32 %s25, 1
        // Predicated region
        $region13: #{tpu_custom_call.1} parent=11 // pred_check
          %p209 = pneg %p58
        $region14: #{tpu_custom_call.1} parent=11 // pred_check_branch
          %211 = sbr.rel (%p209) target = $region16
        $region15: #{tpu_custom_call.1} parent=11 // pred_region
          %213 = vsyncadd [#allocation3], 0
          %s215 = sshll.u32 %s0, 4
          %s216 = int_to_ptr.hbm [resolvable:$true] %s215
          %s217 = sshll.u32 [#allocation2], 4
          %s218 = int_to_ptr.vmem [resolvable:$true] %s217
          %220 = dma.hbm_to_vmem [thread:$0]  %s216, 64, %s218, [#allocation3]
        $region16: #{tpu_custom_call.1} parent=11 // pred_fallthru
          _
      $region12: #{tpu_custom_call.1} parent=5 // pred_fallthru
        _
      %p221 = scmp.lt.s32.totalorder %s25, 3
      // Predicated region
      $region17: #{tpu_custom_call.1} parent=5 // pred_check
        %p222 = pneg %p221
      $region18: #{tpu_custom_call.1} parent=5 // pred_check_branch
        %224 = sbr.rel (%p222) target = $region20
      $region19: #{tpu_custom_call.1} parent=5 // pred_region
        // Predicated region
        $region21: #{tpu_custom_call.1} parent=19 // pred_check
          %p225 = pneg %p78
        $region22: #{tpu_custom_call.1} parent=19 // pred_check_branch
          %227 = sbr.rel (%p225) target = $region24
        $region23: #{tpu_custom_call.1} parent=19 // pred_region
          %s228 = sand.u32 %s25, 1
          %s229 = scalar_lea.sflag [#allocation6], %s228
          %s230 = sand.u32 %s68, 1
          %s231 = smul.addr %s230, 16
          %s232 = scalar_lea.vmem [#allocation5], %s231
          %234 = vsyncadd %s229, 0
          %s235 = smul.addr %s32, 3
          %s236 = smul.addr %s235, 8
          %s237 = scalar_lea.hbm %s1, %s236
          %s238 = sshll.u32 %s237, 4
          %s239 = int_to_ptr.hbm [resolvable:$true] %s238
          %s240 = sshll.u32 %s232, 4
          %s241 = int_to_ptr.vmem [resolvable:$true] %s240
          %246 = dma.hbm_to_vmem [thread:$0]  %s239, 256, %s241, %s229, 128, 128, 8
        $region24: #{tpu_custom_call.1} parent=19 // pred_fallthru
          _
        // Predicated region
        $region25: #{tpu_custom_call.1} parent=19 // pred_check
          %p247 = pneg %p104
        $region26: #{tpu_custom_call.1} parent=19 // pred_check_branch
          %249 = sbr.rel (%p247) target = $region28
        $region27: #{tpu_custom_call.1} parent=19 // pred_region
          %s250 = sand.u32 %s25, 1
          %s251 = scalar_lea.sflag [#allocation6], %s250
          %s252 = sand.u32 %s94, 1
          %s253 = smul.addr %s252, 16
          %s254 = scalar_lea.vmem [#allocation7], %s253
          %256 = vsyncadd %s251, 0
          %s257 = smul.addr %s32, 3
          %s258 = smul.addr %s257, 8
          %s259 = scalar_lea.hbm %s2, %s258
          %s260 = sshll.u32 %s259, 4
          %s261 = int_to_ptr.hbm [resolvable:$true] %s260
          %s262 = sshll.u32 %s254, 4
          %s263 = int_to_ptr.vmem [resolvable:$true] %s262
          %268 = dma.hbm_to_vmem [thread:$0]  %s261, 256, %s263, %s251, 128, 128, 8
        $region28: #{tpu_custom_call.1} parent=19 // pred_fallthru
          _
        // Predicated region
        $region29: #{tpu_custom_call.1} parent=19 // pred_check
          %p269 = pneg %p132
        $region30: #{tpu_custom_call.1} parent=19 // pred_check_branch
          %271 = sbr.rel (%p269) target = $region32
        $region31: #{tpu_custom_call.1} parent=19 // pred_region
          %s272 = sand.u32 %s122, 1
          %s273 = scalar_lea.sflag [#allocation9], %s272
          %s274 = sand.u32 %s122, 1
          %s275 = smul.addr %s274, 64
          %s276 = scalar_lea.vmem [#allocation8], %s275
          %278 = vsyncadd %s273, 0
          %s279 = smul.addr %s32, 20
          %s280 = sadd.s32 %s33, %s279
          %s281 = smul.addr %s280, 4
          %s282 = scalar_lea.hbm %s3, %s281
          %s283 = sshll.u32 %s282, 4
          %s284 = int_to_ptr.hbm [resolvable:$true] %s283
          %s285 = sshll.u32 %s276, 4
          %s286 = int_to_ptr.vmem [resolvable:$true] %s285
          %291 = dma.hbm_to_vmem [thread:$0]  %s284, 1024, %s286, %s273, 64, 64, 4
        $region32: #{tpu_custom_call.1} parent=19 // pred_fallthru
          _
      $region20: #{tpu_custom_call.1} parent=5 // pred_fallthru
        _
      %p292 = scmp.le.s32.totalorder 1, %s25
      %p293 = scmp.lt.s32.totalorder %s25, 4
      %p294 = pnand %p292, %p293
      %p295 = pneg %p294
      // Predicated region
      $region33: #{tpu_custom_call.1} parent=5 // pred_check
        _
      $region34: #{tpu_custom_call.1} parent=5 // pred_check_branch
        %297 = sbr.rel (%p294) target = $region36
      $region35: #{tpu_custom_call.1} parent=5 // pred_region
        %s298 = ssub.s32 %s25, 1
        // Predicated region
        $region37: #{tpu_custom_call.1} parent=35 // pred_check
          %p299 = pneg %p58
        $region38: #{tpu_custom_call.1} parent=35 // pred_check_branch
          %301 = sbr.rel (%p299) target = $region40
        $region39: #{tpu_custom_call.1} parent=35 // pred_region
          %303 = dma.done [#allocation3], 64
        $region40: #{tpu_custom_call.1} parent=35 // pred_fallthru
          _
        %s304 = sand.u32 %s30, 1
        %s305 = scalar_lea.sflag [#allocation6], %s304
        %s306 = sand.u32 %s71, 1
        %s307 = smul.addr %s306, 16
        %s308 = scalar_lea.vmem [#allocation5], %s307
        // Predicated region
        $region41: #{tpu_custom_call.1} parent=35 // pred_check
          %p309 = pneg %p84
        $region42: #{tpu_custom_call.1} parent=35 // pred_check_branch
          %311 = sbr.rel (%p309) target = $region44
        $region43: #{tpu_custom_call.1} parent=35 // pred_region
          %313 = dma.done %s305, 256
        $region44: #{tpu_custom_call.1} parent=35 // pred_fallthru
          _
        %s314 = sand.u32 %s30, 1
        %s315 = scalar_lea.sflag [#allocation6], %s314
        %s316 = sand.u32 %s97, 1
        %s317 = smul.addr %s316, 16
        %s318 = scalar_lea.vmem [#allocation7], %s317
        // Predicated region
        $region45: #{tpu_custom_call.1} parent=35 // pred_check
          %p319 = pneg %p110
        $region46: #{tpu_custom_call.1} parent=35 // pred_check_branch
          %321 = sbr.rel (%p319) target = $region48
        $region47: #{tpu_custom_call.1} parent=35 // pred_region
          %323 = dma.done %s315, 256
        $region48: #{tpu_custom_call.1} parent=35 // pred_fallthru
          _
        %s324 = sand.u32 %s125, 1
        %s325 = scalar_lea.sflag [#allocation9], %s324
        %s326 = sand.u32 %s125, 1
        %s327 = smul.addr %s326, 64
        %s328 = scalar_lea.vmem [#allocation8], %s327
        // Predicated region
        $region49: #{tpu_custom_call.1} parent=35 // pred_check
          %p329 = pneg %p138
        $region50: #{tpu_custom_call.1} parent=35 // pred_check_branch
          %331 = sbr.rel (%p329) target = $region52
        $region51: #{tpu_custom_call.1} parent=35 // pred_region
          %333 = dma.done %s325, 1024
        $region52: #{tpu_custom_call.1} parent=35 // pred_fallthru
          _
        %p334 = pneg %p58
        %p335 = pneg %p55
        %s336 = sand.u32 %s30, 1
        %s337 = scalar_lea.sflag [#allocation6], %s336
        %s338 = sand.u32 %s71, 1
        %s339 = smul.addr %s338, 16
        %s340 = scalar_lea.vmem [#allocation5], %s339
        %p341 = pneg %p84
        %p342 = pneg %p81
        %s343 = sand.u32 %s30, 1
        %s344 = scalar_lea.sflag [#allocation6], %s343
        %s345 = sand.u32 %s97, 1
        %s346 = smul.addr %s345, 16
        %s347 = scalar_lea.vmem [#allocation7], %s346
        %p348 = pneg %p110
        %p349 = pneg %p107
        %s350 = sand.u32 %s125, 1
        %s351 = scalar_lea.sflag [#allocation9], %s350
        %s352 = sand.u32 %s125, 1
        %s353 = smul.addr %s352, 64
        %s354 = scalar_lea.vmem [#allocation8], %s353
        %p355 = pneg %p138
        %p356 = pneg %p135
        %p357 = pneg %p166
        %p358 = pneg %p163
        %s359 = sand.u32 %s153, 1
        %s360 = scalar_lea.sflag [#allocation4], %s359
        %s361 = sand.u32 %s153, 1
        %s362 = smul.addr %s361, 8
        %s363 = scalar_lea.vmem [#allocation10], %s362
        %p364 = pneg %p194
        %p365 = pneg %p191
        %s366 = sand.u32 %s181, 1
        %s367 = scalar_lea.sflag [#allocation12], %s366
        %s368 = sand.u32 %s181, 1
        %s369 = smul.addr %s368, 8
        %s370 = scalar_lea.vmem [#allocation11], %s369
        %v371 = vld [vmem:[#allocation2] sm:$0xf]
        %v372 = vld [vmem:[%s308] sm:$0xff]
        %v373 = vld [vmem:[%s308 + $0x8] sm:$0xff]
        %v374 = vld [vmem:[%s318] sm:$0xff]
        %v375 = vld [vmem:[%s318 + $0x8] sm:$0xff]
        %v376 = vmul.f32 %v372, %v372
        %v377 = vmul.f32 %v373, %v373
        %378 = vadd.xlane.f32.xlu0 %v376
        %v379 = vpop.xlane.xlu0 %378
        %380 = vadd.xlane.f32.xlu0 %v377
        %v381 = vpop.xlane.xlu0 %380
        %v382 = vmax.f32 %v379, 1e-24
        %v383 = vmax.f32 %v381, 1e-24
        %v384 = vrsqrt.pop %v382
        %v385 = vmul.f32 %v384, %v382
        %v386 = vmul.f32 %v385, %v384
        %v387 = vmul.f32 0.5, %v386
        %v388 = vsub.f32 1.5, %v387
        %v389 = vmul.f32 %v384, %v388
        %vm390 = vweird.f32 %v382
        %vm391 = vweird.f32 %v384
        %vm392 = vmor %vm390, %vm391
        %v393 = vsel %vm392, %v384, %v389
        %v394 = vrsqrt.pop %v383
        %v395 = vmul.f32 %v394, %v383
        %v396 = vmul.f32 %v395, %v394
        %v397 = vmul.f32 0.5, %v396
        %v398 = vsub.f32 1.5, %v397
        %v399 = vmul.f32 %v394, %v398
        %vm400 = vweird.f32 %v383
        %vm401 = vweird.f32 %v394
        %vm402 = vmor %vm400, %vm401
        %v403 = vsel %vm402, %v394, %v399
        %v404 = vmul.f32 %v372, %v393
        %v405 = vmul.f32 %v373, %v403
        %v406 = vmul.f32 %v374, %v404
        %v407 = vmul.f32 %v375, %v405
        %408 = vmatpush.xpose.msra.mxu0 0.0
        %409 = vmatpush.xpose.msra.mxu0 0.0
        %410 = vmatpush.xpose.msra.mxu0 0.0
        %411 = vmatpush.xpose.msra.mxu0 0.0
        %412 = vmatpush.xpose.msra.mxu0 0.0
        %413 = vmatpush.xpose.msra.mxu0 0.0
        %414 = vmatpush.xpose.msra.mxu0 0.0
        %415 = vmatpush.xpose.msra.mxu0 0.0
        %416 = vmatpush.xpose.msra.mxu0 0.0
        %417 = vmatpush.xpose.msra.mxu0 0.0
        %418 = vmatpush.xpose.msra.mxu0 0.0
        %419 = vmatpush.xpose.msra.mxu0 0.0
        %420 = vmatpush.xpose.msra.mxu0 0.0
        %421 = vmatpush.xpose.msra.mxu0 0.0
        %422 = vmatpush.xpose.msra.mxu0 %v407
        %423 = vmatpush.xpose.msra.mxu0 %v406
        %424 = vmatmul.f32.gmra.mxu0 %v371
        %v425 = vpop.f32.mrf.mxu0
        %v426 = vadd.f32 0.0, %v425
        %427 = vdwg.mxu0
        %v428 = vmul.f32 %v371, %v371
        %v429 = vmul.f32 %v374, %v374
        %v430 = vmul.f32 %v375, %v375
        %431 = vmatpush.xpose.msra.mxu0 0.0
        %432 = vmatpush.xpose.msra.mxu0 0.0
        %433 = vmatpush.xpose.msra.mxu0 0.0
        %434 = vmatpush.xpose.msra.mxu0 0.0
        %435 = vmatpush.xpose.msra.mxu0 0.0
        %436 = vmatpush.xpose.msra.mxu0 0.0
        %437 = vmatpush.xpose.msra.mxu0 0.0
        %438 = vmatpush.xpose.msra.mxu0 0.0
        %439 = vmatpush.xpose.msra.mxu0 0.0
        %440 = vmatpush.xpose.msra.mxu0 0.0
        %441 = vmatpush.xpose.msra.mxu0 0.0
        %442 = vmatpush.xpose.msra.mxu0 0.0
        %443 = vmatpush.xpose.msra.mxu0 0.0
        %444 = vmatpush.xpose.msra.mxu0 0.0
        %445 = vmatpush.xpose.msra.mxu0 %v430
        %446 = vmatpush.xpose.msra.mxu0 %v429
        %447 = vmatmul.f32.gmra.mxu0 %v428
        %v448 = vpop.f32.mrf.mxu0
        %v449 = vadd.f32 0.0, %v448
        %450 = vdwg.mxu0
        %v451 = vmax.f32 %v449, 1e-24
        %v452 = vrsqrt.pop %v451
        %v453 = vmul.f32 %v452, %v451
        %v454 = vmul.f32 %v453, %v452
        %v455 = vmul.f32 0.5, %v454
        %v456 = vsub.f32 1.5, %v455
        %v457 = vmul.f32 %v452, %v456
        %vm458 = vweird.f32 %v451
        %vm459 = vweird.f32 %v452
        %vm460 = vmor %vm458, %vm459
        %v461 = vsel %vm460, %v452, %v457
        %v462 = vmul.f32 %v426, %v461
        %v463 = vlaneseq
        %v464 = vand.u32 %v463, 127
        %vm465 = vcmp.lt.s32.totalorder %v464, 10
        %v466 = vsel %vm465, %v462, 0.0
        %v467 = vld [vmem:[%s328] sm:$0x1]
        %v468 = vld [vmem:[%s328 + $0x4] sm:$0x1]
        %v469 = vld [vmem:[%s328 + $0x8] sm:$0x1]
        %v470 = vld [vmem:[%s328 + $0xc] sm:$0x1]
        %v471 = vld [vmem:[%s328 + $0x10] sm:$0x1]
        %v472 = vld [vmem:[%s328 + $0x14] sm:$0x1]
        %v473 = vld [vmem:[%s328 + $0x18] sm:$0x1]
        %v474 = vld [vmem:[%s328 + $0x1c] sm:$0x1]
        %v475 = vld [vmem:[%s328 + $0x20] sm:$0x1]
        %v476 = vld [vmem:[%s328 + $0x24] sm:$0x1]
        %v477 = vld [vmem:[%s328 + $0x28] sm:$0x1]
        %v478 = vld [vmem:[%s328 + $0x2c] sm:$0x1]
        %v479 = vld [vmem:[%s328 + $0x30] sm:$0x1]
        %v480 = vld [vmem:[%s328 + $0x34] sm:$0x1]
        %v481 = vld [vmem:[%s328 + $0x38] sm:$0x1]
        %v482 = vld [vmem:[%s328 + $0x3c] sm:$0x1]
        %v499 = vrot.slane %v468, 7
        %vm500 = vcmask 1041409
        %v501 = vsel %vm500, %v499, %v467
        %v502 = vrot.slane %v469, 6
        %vm503 = vcmask 1042434
        %v504 = vsel %vm503, %v502, %v501
        %v505 = vrot.slane %v470, 5
        %vm506 = vcmask 1043459
        %v507 = vsel %vm506, %v505, %v504
        %v508 = vrot.slane %v471, 4
        %vm509 = vcmask 1044484
        %v510 = vsel %vm509, %v508, %v507
        %v511 = vrot.slane %v472, 3
        %vm512 = vcmask 1045509
        %v513 = vsel %vm512, %v511, %v510
        %v514 = vrot.slane %v473, 2
        %vm515 = vcmask 1046534
        %v516 = vsel %vm515, %v514, %v513
        %v517 = vrot.slane %v474, 1
        %vm518 = vcmask 1047559
        %v519 = vsel %vm518, %v517, %v516
        %v520 = vrot.slane %v476, 7
        %v521 = vsel %vm500, %v520, %v475
        %v522 = vrot.slane %v477, 6
        %v523 = vsel %vm503, %v522, %v521
        %v524 = vrot.slane %v478, 5
        %v525 = vsel %vm506, %v524, %v523
        %v526 = vrot.slane %v479, 4
        %v527 = vsel %vm509, %v526, %v525
        %v528 = vrot.slane %v480, 3
        %v529 = vsel %vm512, %v528, %v527
        %v530 = vrot.slane %v481, 2
        %v531 = vsel %vm515, %v530, %v529
        %v532 = vrot.slane %v482, 1
        %v533 = vsel %vm518, %v532, %v531
        %vm536 = vcmask 130048
        %v538 = vsel %vm536, %v466, 0
        %540 = vmatpush.msra.mxu0 0.0
        %541 = vmatpush.msra.mxu0 0.0
        %542 = vmatpush.msra.mxu0 0.0
        %543 = vmatpush.msra.mxu0 0.0
        %544 = vmatpush.msra.mxu0 0.0
        %545 = vmatpush.msra.mxu0 0.0
        %546 = vmatpush.msra.mxu0 0.0
        %547 = vmatpush.msra.mxu0 0.0
        %548 = vmatpush.msra.mxu0 0.0
        %549 = vmatpush.msra.mxu0 0.0
        %550 = vmatpush.msra.mxu0 0.0
        %551 = vmatpush.msra.mxu0 0.0
        %552 = vmatpush.msra.mxu0 0.0
        %553 = vmatpush.msra.mxu0 0.0
        %554 = vmatpush.msra.mxu0 %v533
        %555 = vmatpush.msra.mxu0 %v519
        %556 = vmatmul.f32.gmra.mxu0 %v538
        %v557 = vpop.f32.mrf.mxu0
        %v558 = vadd.f32 0.0, %v557
        %559 = vdwg.mxu0
        %v561 = vrot.slane %v558, 1
        %v562 = vrot.slane %v558, 2
        %v563 = vrot.slane %v558, 3
        %567 = vst [vmem:[%s363] sm:$0x1] %v558
        %568 = vst [vmem:[%s363 + $0x2] sm:$0x1] %v561
        %569 = vst [vmem:[%s363 + $0x4] sm:$0x1] %v562
        %570 = vst [vmem:[%s363 + $0x6] sm:$0x1] %v563
        %v571 = vld [vmem:[%s328 + $0x1] sm:$0x1]
        %v572 = vld [vmem:[%s328 + $0x5] sm:$0x1]
        %v573 = vld [vmem:[%s328 + $0x9] sm:$0x1]
        %v574 = vld [vmem:[%s328 + $0xd] sm:$0x1]
        %v575 = vld [vmem:[%s328 + $0x11] sm:$0x1]
        %v576 = vld [vmem:[%s328 + $0x15] sm:$0x1]
        %v577 = vld [vmem:[%s328 + $0x19] sm:$0x1]
        %v578 = vld [vmem:[%s328 + $0x1d] sm:$0x1]
        %v579 = vld [vmem:[%s328 + $0x21] sm:$0x1]
        %v580 = vld [vmem:[%s328 + $0x25] sm:$0x1]
        %v581 = vld [vmem:[%s328 + $0x29] sm:$0x1]
        %v582 = vld [vmem:[%s328 + $0x2d] sm:$0x1]
        %v583 = vld [vmem:[%s328 + $0x31] sm:$0x1]
        %v584 = vld [vmem:[%s328 + $0x35] sm:$0x1]
        %v585 = vld [vmem:[%s328 + $0x39] sm:$0x1]
        %v586 = vld [vmem:[%s328 + $0x3d] sm:$0x1]
        %v603 = vrot.slane %v572, 7
        %v604 = vsel %vm500, %v603, %v571
        %v605 = vrot.slane %v573, 6
        %v606 = vsel %vm503, %v605, %v604
        %v607 = vrot.slane %v574, 5
        %v608 = vsel %vm506, %v607, %v606
        %v609 = vrot.slane %v575, 4
        %v610 = vsel %vm509, %v609, %v608
        %v611 = vrot.slane %v576, 3
        %v612 = vsel %vm512, %v611, %v610
        %v613 = vrot.slane %v577, 2
        %v614 = vsel %vm515, %v613, %v612
        %v615 = vrot.slane %v578, 1
        %v616 = vsel %vm518, %v615, %v614
        %v617 = vrot.slane %v580, 7
        %v618 = vsel %vm500, %v617, %v579
        %v619 = vrot.slane %v581, 6
        %v620 = vsel %vm503, %v619, %v618
        %v621 = vrot.slane %v582, 5
        %v622 = vsel %vm506, %v621, %v620
        %v623 = vrot.slane %v583, 4
        %v624 = vsel %vm509, %v623, %v622
        %v625 = vrot.slane %v584, 3
        %v626 = vsel %vm512, %v625, %v624
        %v627 = vrot.slane %v585, 2
        %v628 = vsel %vm515, %v627, %v626
        %v629 = vrot.slane %v586, 1
        %v630 = vsel %vm518, %v629, %v628
        %633 = vmatpush.msra.mxu0 0.0
        %634 = vmatpush.msra.mxu0 0.0
        %635 = vmatpush.msra.mxu0 0.0
        %636 = vmatpush.msra.mxu0 0.0
        %637 = vmatpush.msra.mxu0 0.0
        %638 = vmatpush.msra.mxu0 0.0
        %639 = vmatpush.msra.mxu0 0.0
        %640 = vmatpush.msra.mxu0 0.0
        %641 = vmatpush.msra.mxu0 0.0
        %642 = vmatpush.msra.mxu0 0.0
        %643 = vmatpush.msra.mxu0 0.0
        %644 = vmatpush.msra.mxu0 0.0
        %645 = vmatpush.msra.mxu0 0.0
        %646 = vmatpush.msra.mxu0 0.0
        %647 = vmatpush.msra.mxu0 %v630
        %648 = vmatpush.msra.mxu0 %v616
        %649 = vmatmul.f32.gmra.mxu0 %v538
        %v650 = vpop.f32.mrf.mxu0
        %v651 = vadd.f32 0.0, %v650
        %652 = vdwg.mxu0
        %v654 = vrot.slane %v651, 1
        %v655 = vrot.slane %v651, 2
        %v656 = vrot.slane %v651, 3
        %660 = vst [vmem:[%s363 + $0x1] sm:$0x1] %v651
        %661 = vst [vmem:[%s363 + $0x3] sm:$0x1] %v654
        %662 = vst [vmem:[%s363 + $0x5] sm:$0x1] %v655
        %663 = vst [vmem:[%s363 + $0x7] sm:$0x1] %v656
        %v664 = vld [vmem:[%s328 + $0x2] sm:$0x1]
        %v665 = vld [vmem:[%s328 + $0x6] sm:$0x1]
        %v666 = vld [vmem:[%s328 + $0xa] sm:$0x1]
        %v667 = vld [vmem:[%s328 + $0xe] sm:$0x1]
        %v668 = vld [vmem:[%s328 + $0x12] sm:$0x1]
        %v669 = vld [vmem:[%s328 + $0x16] sm:$0x1]
        %v670 = vld [vmem:[%s328 + $0x1a] sm:$0x1]
        %v671 = vld [vmem:[%s328 + $0x1e] sm:$0x1]
        %v672 = vld [vmem:[%s328 + $0x22] sm:$0x1]
        %v673 = vld [vmem:[%s328 + $0x26] sm:$0x1]
        %v674 = vld [vmem:[%s328 + $0x2a] sm:$0x1]
        %v675 = vld [vmem:[%s328 + $0x2e] sm:$0x1]
        %v676 = vld [vmem:[%s328 + $0x32] sm:$0x1]
        %v677 = vld [vmem:[%s328 + $0x36] sm:$0x1]
        %v678 = vld [vmem:[%s328 + $0x3a] sm:$0x1]
        %v679 = vld [vmem:[%s328 + $0x3e] sm:$0x1]
        %v696 = vrot.slane %v665, 7
        %v697 = vsel %vm500, %v696, %v664
        %v698 = vrot.slane %v666, 6
        %v699 = vsel %vm503, %v698, %v697
        %v700 = vrot.slane %v667, 5
        %v701 = vsel %vm506, %v700, %v699
        %v702 = vrot.slane %v668, 4
        %v703 = vsel %vm509, %v702, %v701
        %v704 = vrot.slane %v669, 3
        %v705 = vsel %vm512, %v704, %v703
        %v706 = vrot.slane %v670, 2
        %v707 = vsel %vm515, %v706, %v705
        %v708 = vrot.slane %v671, 1
        %v709 = vsel %vm518, %v708, %v707
        %v710 = vrot.slane %v673, 7
        %v711 = vsel %vm500, %v710, %v672
        %v712 = vrot.slane %v674, 6
        %v713 = vsel %vm503, %v712, %v711
        %v714 = vrot.slane %v675, 5
        %v715 = vsel %vm506, %v714, %v713
        %v716 = vrot.slane %v676, 4
        %v717 = vsel %vm509, %v716, %v715
        %v718 = vrot.slane %v677, 3
        %v719 = vsel %vm512, %v718, %v717
        %v720 = vrot.slane %v678, 2
        %v721 = vsel %vm515, %v720, %v719
        %v722 = vrot.slane %v679, 1
        %v723 = vsel %vm518, %v722, %v721
        %726 = vmatpush.msra.mxu0 0.0
        %727 = vmatpush.msra.mxu0 0.0
        %728 = vmatpush.msra.mxu0 0.0
        %729 = vmatpush.msra.mxu0 0.0
        %730 = vmatpush.msra.mxu0 0.0
        %731 = vmatpush.msra.mxu0 0.0
        %732 = vmatpush.msra.mxu0 0.0
        %733 = vmatpush.msra.mxu0 0.0
        %734 = vmatpush.msra.mxu0 0.0
        %735 = vmatpush.msra.mxu0 0.0
        %736 = vmatpush.msra.mxu0 0.0
        %737 = vmatpush.msra.mxu0 0.0
        %738 = vmatpush.msra.mxu0 0.0
        %739 = vmatpush.msra.mxu0 0.0
        %740 = vmatpush.msra.mxu0 %v723
        %741 = vmatpush.msra.mxu0 %v709
        %742 = vmatmul.f32.gmra.mxu0 %v538
        %v743 = vpop.f32.mrf.mxu0
        %v744 = vadd.f32 0.0, %v743
        %745 = vdwg.mxu0
        %v747 = vrot.slane %v744, 1
        %v748 = vrot.slane %v744, 2
        %v749 = vrot.slane %v744, 3
        %753 = vst [vmem:[%s370] sm:$0x1] %v744
        %754 = vst [vmem:[%s370 + $0x2] sm:$0x1] %v747
        %755 = vst [vmem:[%s370 + $0x4] sm:$0x1] %v748
        %756 = vst [vmem:[%s370 + $0x6] sm:$0x1] %v749
        %v757 = vld [vmem:[%s328 + $0x3] sm:$0x1]
        %v758 = vld [vmem:[%s328 + $0x7] sm:$0x1]
        %v759 = vld [vmem:[%s328 + $0xb] sm:$0x1]
        %v760 = vld [vmem:[%s328 + $0xf] sm:$0x1]
        %v761 = vld [vmem:[%s328 + $0x13] sm:$0x1]
        %v762 = vld [vmem:[%s328 + $0x17] sm:$0x1]
        %v763 = vld [vmem:[%s328 + $0x1b] sm:$0x1]
        %v764 = vld [vmem:[%s328 + $0x1f] sm:$0x1]
        %v765 = vld [vmem:[%s328 + $0x23] sm:$0x1]
        %v766 = vld [vmem:[%s328 + $0x27] sm:$0x1]
        %v767 = vld [vmem:[%s328 + $0x2b] sm:$0x1]
        %v768 = vld [vmem:[%s328 + $0x2f] sm:$0x1]
        %v769 = vld [vmem:[%s328 + $0x33] sm:$0x1]
        %v770 = vld [vmem:[%s328 + $0x37] sm:$0x1]
        %v771 = vld [vmem:[%s328 + $0x3b] sm:$0x1]
        %v772 = vld [vmem:[%s328 + $0x3f] sm:$0x1]
        %v789 = vrot.slane %v758, 7
        %v790 = vsel %vm500, %v789, %v757
        %v791 = vrot.slane %v759, 6
        %v792 = vsel %vm503, %v791, %v790
        %v793 = vrot.slane %v760, 5
        %v794 = vsel %vm506, %v793, %v792
        %v795 = vrot.slane %v761, 4
        %v796 = vsel %vm509, %v795, %v794
        %v797 = vrot.slane %v762, 3
        %v798 = vsel %vm512, %v797, %v796
        %v799 = vrot.slane %v763, 2
        %v800 = vsel %vm515, %v799, %v798
        %v801 = vrot.slane %v764, 1
        %v802 = vsel %vm518, %v801, %v800
        %v803 = vrot.slane %v766, 7
        %v804 = vsel %vm500, %v803, %v765
        %v805 = vrot.slane %v767, 6
        %v806 = vsel %vm503, %v805, %v804
        %v807 = vrot.slane %v768, 5
        %v808 = vsel %vm506, %v807, %v806
        %v809 = vrot.slane %v769, 4
        %v810 = vsel %vm509, %v809, %v808
        %v811 = vrot.slane %v770, 3
        %v812 = vsel %vm512, %v811, %v810
        %v813 = vrot.slane %v771, 2
        %v814 = vsel %vm515, %v813, %v812
        %v815 = vrot.slane %v772, 1
        %v816 = vsel %vm518, %v815, %v814
        %819 = vmatpush.msra.mxu0 0.0
        %820 = vmatpush.msra.mxu0 0.0
        %821 = vmatpush.msra.mxu0 0.0
        %822 = vmatpush.msra.mxu0 0.0
        %823 = vmatpush.msra.mxu0 0.0
        %824 = vmatpush.msra.mxu0 0.0
        %825 = vmatpush.msra.mxu0 0.0
        %826 = vmatpush.msra.mxu0 0.0
        %827 = vmatpush.msra.mxu0 0.0
        %828 = vmatpush.msra.mxu0 0.0
        %829 = vmatpush.msra.mxu0 0.0
        %830 = vmatpush.msra.mxu0 0.0
        %831 = vmatpush.msra.mxu0 0.0
        %832 = vmatpush.msra.mxu0 0.0
        %833 = vmatpush.msra.mxu0 %v816
        %834 = vmatpush.msra.mxu0 %v802
        %835 = vmatmul.f32.gmra.mxu0 %v538
        %v836 = vpop.f32.mrf.mxu0
        %v837 = vadd.f32 0.0, %v836
        %838 = vdwg.mxu0
        %v840 = vrot.slane %v837, 1
        %v841 = vrot.slane %v837, 2
        %v842 = vrot.slane %v837, 3
        %846 = vst [vmem:[%s370 + $0x1] sm:$0x1] %v837
        %847 = vst [vmem:[%s370 + $0x3] sm:$0x1] %v840
        %848 = vst [vmem:[%s370 + $0x5] sm:$0x1] %v841
        %849 = vst [vmem:[%s370 + $0x7] sm:$0x1] %v842
        %s850 = sand.u32 %s153, 1
        %s851 = scalar_lea.sflag [#allocation4], %s850
        %s852 = sand.u32 %s153, 1
        %s853 = smul.addr %s852, 8
        %s854 = scalar_lea.vmem [#allocation10], %s853
        %s855 = sand.u32 %s181, 1
        %s856 = scalar_lea.sflag [#allocation12], %s855
        %s857 = sand.u32 %s181, 1
        %s858 = smul.addr %s857, 8
        %s859 = scalar_lea.vmem [#allocation11], %s858
        // Predicated region
        $region53: #{tpu_custom_call.1} parent=35 // pred_check
          %p860 = pneg %p163
        $region54: #{tpu_custom_call.1} parent=35 // pred_check_branch
          %862 = sbr.rel (%p860) target = $region56
        $region55: #{tpu_custom_call.1} parent=35 // pred_region
          %864 = vsyncadd %s851, 0
          %s865 = smul.addr %s34, 4
          %s866 = sadd.s32 %s35, %s865
          %s867 = smul.addr %s866, 2
          %s868 = scalar_lea.hbm %s4, %s867
          %s869 = sshll.u32 %s854, 4
          %s870 = int_to_ptr.vmem [resolvable:$true] %s869
          %s871 = sshll.u32 %s868, 4
          %s872 = int_to_ptr.hbm [resolvable:$true] %s871
          %877 = dma.vmem_to_hbm [thread:$0]  %s870, 128, %s872, %s851, 32, 32, 2
        $region56: #{tpu_custom_call.1} parent=35 // pred_fallthru
          _
        // Predicated region
        $region57: #{tpu_custom_call.1} parent=35 // pred_check
          %p878 = pneg %p191
        $region58: #{tpu_custom_call.1} parent=35 // pred_check_branch
          %880 = sbr.rel (%p878) target = $region60
        $region59: #{tpu_custom_call.1} parent=35 // pred_region
          %882 = vsyncadd %s856, 0
          %s883 = smul.addr %s34, 4
          %s884 = sadd.s32 %s35, %s883
          %s885 = smul.addr %s884, 2
          %s886 = scalar_lea.hbm %s5, %s885
          %s887 = sshll.u32 %s859, 4
          %s888 = int_to_ptr.vmem [resolvable:$true] %s887
          %s889 = sshll.u32 %s886, 4
          %s890 = int_to_ptr.hbm [resolvable:$true] %s889
          %895 = dma.vmem_to_hbm [thread:$0]  %s888, 128, %s890, %s856, 32, 32, 2
        $region60: #{tpu_custom_call.1} parent=35 // pred_fallthru
          _
      $region36: #{tpu_custom_call.1} parent=5 // pred_fallthru
        _
      %p896 = scmp.le.s32.totalorder 2, %s25
      // Predicated region
      $region61: #{tpu_custom_call.1} parent=5 // pred_check
        %p897 = pneg %p896
      $region62: #{tpu_custom_call.1} parent=5 // pred_check_branch
        %899 = sbr.rel (%p897) target = $region64
      $region63: #{tpu_custom_call.1} parent=5 // pred_region
        %s900 = ssub.s32 %s25, 2
        // Predicated region
        $region65: #{tpu_custom_call.1} parent=63 // pred_check
          %p901 = pneg %p169
        $region66: #{tpu_custom_call.1} parent=63 // pred_check_branch
          %903 = sbr.rel (%p901) target = $region68
        $region67: #{tpu_custom_call.1} parent=63 // pred_region
          %s904 = sand.u32 %s154, 1
          %s905 = scalar_lea.sflag [#allocation4], %s904
          %s906 = sand.u32 %s154, 1
          %s907 = smul.addr %s906, 8
          %s908 = scalar_lea.vmem [#allocation10], %s907
          %910 = dma.done %s905, 128
        $region68: #{tpu_custom_call.1} parent=63 // pred_fallthru
          _
        // Predicated region
        $region69: #{tpu_custom_call.1} parent=63 // pred_check
          %p911 = pneg %p197
        $region70: #{tpu_custom_call.1} parent=63 // pred_check_branch
          %913 = sbr.rel (%p911) target = $region72
        $region71: #{tpu_custom_call.1} parent=63 // pred_region
          %s914 = sand.u32 %s182, 1
          %s915 = scalar_lea.sflag [#allocation12], %s914
          %s916 = sand.u32 %s182, 1
          %s917 = smul.addr %s916, 8
          %s918 = scalar_lea.vmem [#allocation11], %s917
          %920 = dma.done %s915, 128
        $region72: #{tpu_custom_call.1} parent=63 // pred_fallthru
          _
      $region64: #{tpu_custom_call.1} parent=5 // pred_fallthru
        _
    $region6: #{tpu_custom_call.1} parent=1 // loop_footer
      %s29 = sadd.s32 1, %s25
    $region7: #{tpu_custom_call.1} parent=1 // loop_footer_branch
      %24 = sbr.rel target = $region3
    $region8: #{tpu_custom_call.1} parent=1 // loop_exit
      _
    %921 = vsyncpa [#allocation3], 1
    %s922 = scalar_lea.sflag [#allocation3], 1
    %923 = vsyncpa %s922, 1
    %924 = vsyncpa [#allocation6], 1
    %s925 = scalar_lea.sflag [#allocation6], 1
    %926 = vsyncpa %s925, 1
    %927 = vsyncpa [#allocation9], 1
    %s928 = scalar_lea.sflag [#allocation9], 1
    %929 = vsyncpa %s928, 1
    %930 = vsyncpa [#allocation4], 1
    %s931 = scalar_lea.sflag [#allocation4], 1
    %932 = vsyncpa %s931, 1
    %933 = vsyncpa [#allocation12], 1
    %s934 = scalar_lea.sflag [#allocation12], 1
    %935 = vsyncpa %s934, 1

</llo_original>
